<compile_context>
chip_gen: v7x
topology: tpu7x:2x2x1
jax: 0.10.0
libtpu: 0.0.40
codegen_flags: <defaults>
</compile_context>

<pallas_src>
import functools

import jax
import jax.numpy as jnp
from jax.experimental import pallas as pl
from jax.experimental.pallas import tpu as pltpu

_LANES = 128
_SUBLANES = 8


# --------------------------------------------------------------------------
# Chip detection (best effort; falls back to the safe single-core config).
# --------------------------------------------------------------------------
def _device_kind() -> str:
    try:
        return jax.devices()[0].device_kind.lower()
    except Exception:  # pragma: no cover - defensive
        return ""


def _is_v7x() -> bool:
    k = _device_kind()
    return ("v7" in k) or ("7x" in k)


def _chip_config():
    """Returns (num_slices, per-input target block bytes)."""
    k = _device_kind()
    if _is_v7x():
        # 2 TensorCores/chip, ~3.2 TB/s HBM: bigger blocks amortize the
        # ~0.35 us/step fixed cost; 2 in x 2 buf x 2 MiB = 8 MiB VMEM.
        return 2, 2 * 1024 * 1024
    if ("v5p" in k) or ("v4" in k and "lite" not in k):
        # Megacore chips: keep the 2-way split, 1 MiB per-input blocks.
        return 2, 1024 * 1024
    # Single-TensorCore chips (v5e / v6e / unknown): no split.
    return 1, 1024 * 1024


# --------------------------------------------------------------------------
# Kernel
# --------------------------------------------------------------------------
def _mape_kernel(pred_ref, tgt_ref, out_ref, acc_ref, *, epsilon, rows_total,
                 block_rows, blocks_per_slice, num_full_blocks, mask_needed,
                 approx_reciprocal):
    c = pl.program_id(0)            # slice index (TensorCore on multi-TC chips)
    i = pl.program_id(1)            # row-block index within the slice

    @pl.when(i == 0)
    def _init():
        acc_ref[...] = jnp.zeros_like(acc_ref)

    pred = pred_ref[...].astype(jnp.float32)
    tgt = tgt_ref[...].astype(jnp.float32)

    tabs = jnp.maximum(jnp.abs(tgt), jnp.float32(epsilon))
    inv = pl.reciprocal(tabs, approx=approx_reciprocal)
    if approx_reciprocal:
        # One Newton-Raphson step restores f32-level accuracy while keeping
        # the reciprocal on the EUP slot.
        inv = inv * (jnp.float32(2.0) - tabs * inv)
    contrib = jnp.abs(pred - tgt) * inv

    def _accumulate(x):
        # Fold the block into the (8, 128) running sum: pure VPU vadds, no
        # per-step cross-lane reduce or SMEM round-trip.
        if block_rows % _SUBLANES == 0:
            acc_ref[...] += x.reshape(-1, _SUBLANES, _LANES).sum(axis=0)
        else:
            # Tiny full-array block (< 8 rows): single cross-sublane reduce.
            acc_ref[0:1, :] += x.sum(axis=0, keepdims=True)

    if mask_needed:
        block_idx = c * blocks_per_slice + i

        # Hot path: blocks fully inside the array need no mask at all.
        @pl.when(block_idx < num_full_blocks)
        def _full():
            _accumulate(contrib)

        # Cold path: the partial last block and/or duplicate blocks created by
        # the slice split.  jnp.where is a select, so garbage (even NaN) in the
        # out-of-range rows of a partial DMA cannot leak into the sum.
        @pl.when(block_idx >= num_full_blocks)
        def _ragged():
            local_row = jax.lax.broadcasted_iota(jnp.int32, contrib.shape, 0)
            global_row = block_idx * block_rows + local_row
            _accumulate(jnp.where(global_row < rows_total, contrib,
                                  jnp.float32(0.0)))
    else:
        _accumulate(contrib)

    @pl.when(i == pl.num_programs(1) - 1)
    def _finalize():
        out_ref[0, 0] = jnp.sum(acc_ref[...])


# --------------------------------------------------------------------------
# Wrapper
# --------------------------------------------------------------------------
def mape(prediction: jax.Array, target: jax.Array, epsilon: float = 1e-8,
         approx_reciprocal: bool = False) -> jax.Array:
    """Mean absolute percentage error, matching the PyTorch MAPE module."""
    assert prediction.shape == target.shape, "shape mismatch"
    n = prediction.size

    # Flatten (free). Do NOT upcast here: sub-32-bit inputs are loaded in
    # their native dtype and cast inside the kernel, halving HBM traffic.
    pred_flat = prediction.reshape(-1)
    tgt_flat = target.reshape(-1)

    # Only ragged sizes (numel % 128 != 0) pad, and only by <= 127 elements.
    # Padding with ONES makes each padded element contribute exactly 0
    # (|1-1| / max(1, eps) == 0) even for epsilon == 0.
    # TODO(synk): a fully copy-free ragged path would mask the tail lanes
    # in-kernel on the unpadded 1-D data instead of materializing this pad.
    pad = (-n) % _LANES
    if pad:
        pred_flat = jnp.pad(pred_flat, (0, pad), constant_values=1)
        tgt_flat = jnp.pad(tgt_flat, (0, pad), constant_values=1)

    rows = (n + pad) // _LANES
    pred2d = pred_flat.reshape(rows, _LANES)
    tgt2d = tgt_flat.reshape(rows, _LANES)

    num_slices, target_block_bytes = _chip_config()

    # Size the block by bytes (per input), keeping sublane-packing granularity.
    itemsize_max = max(pred2d.dtype.itemsize, tgt2d.dtype.itemsize)
    itemsize_min = min(pred2d.dtype.itemsize, tgt2d.dtype.itemsize)
    gran = max(_SUBLANES, 32 // max(1, itemsize_min))
    target_rows = max(gran,
                      (target_block_bytes // (_LANES * itemsize_max))
                      // gran * gran)

    if rows <= target_rows:
        block_rows = rows        # single full-array block (always a legal shape)
        num_slices = 1           # nothing worth sharding
    else:
        block_rows = target_rows

    num_blocks = pl.cdiv(rows, block_rows)
    if num_blocks < num_slices:
        num_slices = 1
    blocks_per_slice = pl.cdiv(num_blocks, num_slices)
    num_full_blocks = rows // block_rows     # blocks fully inside the array
    mask_needed = num_full_blocks != blocks_per_slice * num_slices

    if mask_needed:
        last_block = num_blocks - 1

        def block_index(c, i):
            # Clamp so duplicate (c, i) pairs from the slice split still issue
            # an in-bounds DMA; their contribution is zeroed by the row mask.
            return (jnp.minimum(c * blocks_per_slice + i, last_block), 0)
    else:
        def block_index(c, i):
            return (c * blocks_per_slice + i, 0)

    kernel = functools.partial(
        _mape_kernel,
        epsilon=epsilon,
        rows_total=rows,
        block_rows=block_rows,
        blocks_per_slice=blocks_per_slice,
        num_full_blocks=num_full_blocks,
        mask_needed=mask_needed,
        approx_reciprocal=approx_reciprocal,
    )

    # Slice axis semantics: CORE_PARALLEL on v7x so both TensorCores pull HBM
    # (the kernel is pure HBM-BW bound); plain "parallel" elsewhere.
    sem_axis0 = "parallel"
    core_parallel = getattr(pltpu, "CORE_PARALLEL", None)
    if num_slices >= 2 and _is_v7x() and core_parallel is not None:
        sem_axis0 = core_parallel

    def _call(sem0):
        return pl.pallas_call(
            kernel,
            out_shape=jax.ShapeDtypeStruct((num_slices, 1), jnp.float32),
            grid_spec=pltpu.PrefetchScalarGridSpec(
                num_scalar_prefetch=0,
                grid=(num_slices, blocks_per_slice),
                in_specs=[
                    pl.BlockSpec((block_rows, _LANES), block_index),
                    pl.BlockSpec((block_rows, _LANES), block_index),
                ],
                out_specs=pl.BlockSpec(
                    (1, 1), lambda c, i: (c, 0), memory_space=pltpu.SMEM),
                scratch_shapes=[pltpu.VMEM((_SUBLANES, _LANES), jnp.float32)],
            ),
            compiler_params=pltpu.CompilerParams(
                dimension_semantics=(sem0, "arbitrary")),
        )(pred2d, tgt2d)

    try:
        partials = _call(sem_axis0)
    except Exception:
        if sem_axis0 == "parallel":
            raise
        # Fall back if CORE_PARALLEL is rejected on this jax/libtpu build.
        partials = _call("parallel")

    # Normalize by the ORIGINAL element count.
    return jnp.sum(partials) / jnp.float32(n)


def _mape_ref(prediction, target, epsilon=1e-8):
    tabs = jnp.abs(target)
    tabs = jnp.where(tabs < epsilon, epsilon, tabs)
    return jnp.mean(jnp.abs(prediction - target) / tabs)


if __name__ == "__main__":
    key = jax.random.PRNGKey(0)
    k1, k2 = jax.random.split(key)

    shape = (2, 4, 16, 16)  # small NCHW-like tensor
    prediction = jax.random.normal(k1, shape, dtype=jnp.float32)
    target = jax.random.normal(k2, shape, dtype=jnp.float32)
    # Include a few exact zeros in the target to exercise the epsilon clamp.
    target = target.at[0, 0, 0, :4].set(0.0)

    result = mape(prediction, target)
    result = jax.block_until_ready(result)

    expected = _mape_ref(prediction, target)
    assert jnp.allclose(result, expected, rtol=1e-5, atol=1e-6), (
        f"mismatch: kernel={result}, ref={expected}"
    )
    print("KERNEL_OK")
</pallas_src>

<mosaic_0001>
module attributes {stable_mosaic.version = 11 : i64} {
  func.func @_mape_kernel(%arg0: i32, %arg1: i32, %arg2: memref<16x128xf32, #tpu.memory_space<vmem>>, %arg3: memref<16x128xf32, #tpu.memory_space<vmem>>, %arg4: memref<1x1xf32, #tpu.memory_space<smem>>, %arg5: memref<8x128xf32, #tpu.memory_space<vmem>>) attributes {dimension_semantics = [#tpu.dimension_semantics<parallel>, #tpu.dimension_semantics<arbitrary>], iteration_bounds = array<i64: 1, 1>, scalar_prefetch = 0 : i64, scratch_operands = 1 : i64, tpu.core_type = #tpu.core_type<tc>, window_params = [{transform_indices = @transform_0, window_bounds = array<i64: 16, 128>}, {transform_indices = @transform_1, window_bounds = array<i64: 16, 128>}, {transform_indices = @transform_2, window_bounds = array<i64: 1, 1>}]} {
    %c0_i32 = arith.constant 0 : i32
    %0 = arith.cmpi eq, %arg1, %c0_i32 : i32
    %1 = arith.extui %0 : i1 to i32
    %c0_i32_0 = arith.constant 0 : i32
    %2 = arith.cmpi ne, %1, %c0_i32_0 : i32
    scf.if %2 {
      %cst_11 = arith.constant 0.000000e+00 : f32
      %20 = vector.broadcast %cst_11 : f32 to vector<8x128xf32>
      %c0_12 = arith.constant 0 : index
      %c0_13 = arith.constant 0 : index
      %21 = vector.load %arg5[%c0_12, %c0_13] : memref<8x128xf32, #tpu.memory_space<vmem>>, vector<8x128xf32>
      tpu.vector_store %arg5[%c0_12, %c0_13], %20 {strides = array<i32>} : memref<8x128xf32, #tpu.memory_space<vmem>>, vector<8x128xf32>,
    } else {
    }
    %c0 = arith.constant 0 : index
    %c0_1 = arith.constant 0 : index
    %3 = vector.load %arg2[%c0, %c0_1] : memref<16x128xf32, #tpu.memory_space<vmem>>, vector<16x128xf32>
    %c0_2 = arith.constant 0 : index
    %c0_3 = arith.constant 0 : index
    %4 = vector.load %arg3[%c0_2, %c0_3] : memref<16x128xf32, #tpu.memory_space<vmem>>, vector<16x128xf32>
    %5 = math.absf %4 : vector<16x128xf32>
    %cst = arith.constant 9.99999993E-9 : f32
    %6 = vector.broadcast %cst : f32 to vector<16x128xf32>
    %7 = arith.maximumf %5, %6 : vector<16x128xf32>
    %8 = tpu.reciprocal %7 : vector<16x128xf32> -> vector<16x128xf32>
    %9 = arith.subf %3, %4 : vector<16x128xf32>
    %10 = math.absf %9 : vector<16x128xf32>
    %11 = arith.mulf %10, %8 : vector<16x128xf32>
    %c0_4 = arith.constant 0 : index
    %c0_5 = arith.constant 0 : index
    %12 = vector.load %arg5[%c0_4, %c0_5] : memref<8x128xf32, #tpu.memory_space<vmem>>, vector<8x128xf32>
    %13 = vector.shape_cast %11 : vector<16x128xf32> to vector<2x8x128xf32>
    %cst_6 = arith.constant dense<0.000000e+00> : vector<8x128xf32>
    %14 = vector.multi_reduction <add>, %13, %cst_6 [0] : vector<2x8x128xf32> to vector<8x128xf32>
    %15 = arith.addf %12, %14 : vector<8x128xf32>
    %c0_7 = arith.constant 0 : index
    %c0_8 = arith.constant 0 : index
    %16 = vector.load %arg5[%c0_7, %c0_8] : memref<8x128xf32, #tpu.memory_space<vmem>>, vector<8x128xf32>
    tpu.vector_store %arg5[%c0_7, %c0_8], %15 {strides = array<i32>} : memref<8x128xf32, #tpu.memory_space<vmem>>, vector<8x128xf32>,
    %c0_i32_9 = arith.constant 0 : i32
    %17 = arith.cmpi eq, %arg1, %c0_i32_9 : i32
    %18 = arith.extui %17 : i1 to i32
    %c0_i32_10 = arith.constant 0 : i32
    %19 = arith.cmpi ne, %18, %c0_i32_10 : i32
    scf.if %19 {
      %c0_11 = arith.constant 0 : index
      %c0_12 = arith.constant 0 : index
      %20 = vector.load %arg5[%c0_11, %c0_12] : memref<8x128xf32, #tpu.memory_space<vmem>>, vector<8x128xf32>
      %21 = vector.shape_cast %20 : vector<8x128xf32> to vector<1x8x128xf32>
      %cst_13 = arith.constant dense<0.000000e+00> : vector<1xf32>
      %22 = vector.multi_reduction <add>, %21, %cst_13 [1, 2] : vector<1x8x128xf32> to vector<1xf32>
      %23 = vector.shape_cast %22 : vector<1xf32> to vector<1x1x1xf32>
      %24 = vector.extract %23[0, 0, 0] : f32 from vector<1x1x1xf32>
      %c0_14 = arith.constant 0 : index
      %c0_15 = arith.constant 0 : index
      %25 = memref.load %arg4[%c0_14, %c0_15] : memref<1x1xf32, #tpu.memory_space<smem>>
      memref.store %24, %arg4[%c0_14, %c0_15] : memref<1x1xf32, #tpu.memory_space<smem>>
    } else {
    }
    return
  }
  func.func @transform_0(%arg0: i32, %arg1: i32) -> (i32, i32) {
    %c1_i32 = arith.constant 1 : i32
    %0 = arith.muli %arg0, %c1_i32 : i32
    %1 = arith.addi %0, %arg1 : i32
    %c0_i32 = arith.constant 0 : i32
    %c0_i32_0 = arith.constant 0 : i32
    return %1, %c0_i32 : i32, i32
  }
  func.func @transform_1(%arg0: i32, %arg1: i32) -> (i32, i32) {
    %c1_i32 = arith.constant 1 : i32
    %0 = arith.muli %arg0, %c1_i32 : i32
    %1 = arith.addi %0, %arg1 : i32
    %c0_i32 = arith.constant 0 : i32
    %c0_i32_0 = arith.constant 0 : i32
    return %1, %c0_i32 : i32, i32
  }
  func.func @transform_2(%arg0: i32, %arg1: i32) -> (i32, i32) {
    %c0_i32 = arith.constant 0 : i32
    %c0_i32_0 = arith.constant 0 : i32
    return %arg0, %c0_i32 : i32, i32
  }
}

</mosaic_0001>

<llo_original>
// kernel: tpu_custom_call.1
$region0: #{tpu_custom_call.1}
  #allocation0 [shape = 'u32[]', space=smem, size = 0x4, offset = 0x4, fixed_abs, tag = 'smem constant byte address 0x4 - core index']
  #allocation1 [shape = 'u32[144,128]{1,0:T(1,128)}', space=vmem, size = 0x12000, scoped, tag = 'internal scratch']
  #allocation2 [shape = 'f32[8,128]{1,0:T(8,128)}', space=vmem, size = 0x1000, scoped, tag = 'scratch operand']
  %s0 = inlined_call_operand.hbm [shape: f32[16,128], index: 0, kind: input, shape index: {}]
  %s1 = inlined_call_operand.hbm [shape: f32[16,128], index: 1, kind: input, shape index: {}]
  %s2 = inlined_call_operand.hbm [shape: f32[1,1], index: 2, kind: output, shape index: {}]
  %s3 = sld [smem:[#allocation0]]
  $region34: #{tpu_custom_call.1} parent=0
    _
  %s5 = ssub.s32 1, %s3
  %s6 = scalar_select 0, %s5, %s3
  $region1: #{tpu_custom_call.1} parent=0
    #allocation3 [shape = 'u8[8192]{0}', space=vmem, size = 0x2000, scoped, tag = 'input window, operand 0, single buffered']
    #allocation4 [shape = 's32[1]{0}', space=sflag, size = 0x4, scoped, tag = 'scoped memory for tpu_custom_call.1']
    #allocation5 [shape = 's32[1]{0}', space=sflag, size = 0x4, scoped, tag = 'scoped memory for tpu_custom_call.1']
    #allocation6 [shape = 'u8[8192]{0}', space=vmem, size = 0x2000, scoped, tag = 'input window, operand 1, single buffered']
    #allocation7 [shape = 's32[1]{0}', space=sflag, size = 0x4, scoped, tag = 'scoped memory for tpu_custom_call.1']
    #allocation8 [shape = 'u8[512]{0}', space=smem, size = 0x200, scoped, tag = 'output window, operand 0, single buffered']
    %7 = vsyncpa [#allocation4], 0
    %8 = vsyncpa [#allocation7], 0
    %9 = vsyncpa [#allocation5], 0
    // Predicated region
    $region2: #{tpu_custom_call.1} parent=1 // pred_check
      _
    $region3: #{tpu_custom_call.1} parent=1 // pred_check_branch
      %11 = sbr.rel (0) target = $region5
    $region4: #{tpu_custom_call.1} parent=1 // pred_region
      %s12 = sadd.s32 0, 0
      %s13 = smul.u32 2, %s12
      %s15 = ssub.s32 256, 256
      %16 = vsyncadd [#allocation4], %s15
      %s17 = smul.addr %s13, 128
      %s18 = scalar_lea.hbm %s0, %s17
      %s19 = sshll.u32 [#allocation3], 4
      %s20 = int_to_ptr.vmem [resolvable:$true] %s19
      %25 = dma.hbm_to_vmem [thread:$0]  %s18, 256, %s20, [#allocation4], 128, 128, 8
    $region5: #{tpu_custom_call.1} parent=1 // pred_fallthru
      _
    // Predicated region
    $region6: #{tpu_custom_call.1} parent=1 // pred_check
      _
    $region7: #{tpu_custom_call.1} parent=1 // pred_check_branch
      %27 = sbr.rel (0) target = $region9
    $region8: #{tpu_custom_call.1} parent=1 // pred_region
      %s28 = sadd.s32 0, 0
      %s29 = smul.u32 2, %s28
      %s31 = ssub.s32 256, 256
      %32 = vsyncadd [#allocation7], %s31
      %s33 = smul.addr %s29, 128
      %s34 = scalar_lea.hbm %s1, %s33
      %s35 = sshll.u32 [#allocation6], 4
      %s36 = int_to_ptr.vmem [resolvable:$true] %s35
      %41 = dma.hbm_to_vmem [thread:$0]  %s34, 256, %s36, [#allocation7], 128, 128, 8
    $region9: #{tpu_custom_call.1} parent=1 // pred_fallthru
      _
    // Predicated region
    $region10: #{tpu_custom_call.1} parent=1 // pred_check
      _
    $region11: #{tpu_custom_call.1} parent=1 // pred_check_branch
      %43 = sbr.rel (0) target = $region13
    $region12: #{tpu_custom_call.1} parent=1 // pred_region
      %44 = dma.done [#allocation4], 256
    $region13: #{tpu_custom_call.1} parent=1 // pred_fallthru
      _
    // Predicated region
    $region14: #{tpu_custom_call.1} parent=1 // pred_check
      _
    $region15: #{tpu_custom_call.1} parent=1 // pred_check_branch
      %46 = sbr.rel (0) target = $region17
    $region16: #{tpu_custom_call.1} parent=1 // pred_region
      %47 = dma.done [#allocation7], 256
    $region17: #{tpu_custom_call.1} parent=1 // pred_fallthru
      _
    %s48 = sadd.s32 0, 0
    %s49 = smul.u32 2, %s48
    %s50 = sadd.s32 0, 0
    %s51 = smul.u32 2, %s50
    %p52 = scmp.eq.s32.totalorder 0, 0
    // Predicated region
    $region18: #{tpu_custom_call.1} parent=1 // pred_check
      %p53 = pneg %p52
    $region19: #{tpu_custom_call.1} parent=1 // pred_check_branch
      %55 = sbr.rel (%p53) target = $region21
    $region20: #{tpu_custom_call.1} parent=1 // pred_region
      %56 = vst [vmem:[#allocation2] sm:$0xff] 0.0
    $region21: #{tpu_custom_call.1} parent=1 // pred_fallthru
      _
    %v57 = vld [vmem:[#allocation3] sm:$0xff]
    %v58 = vld [vmem:[#allocation3 + $0x8] sm:$0xff]
    %v59 = vld [vmem:[#allocation6] sm:$0xff]
    %v60 = vld [vmem:[#allocation6 + $0x8] sm:$0xff]
    %v61 = vand.u32 2147483647, %v59
    %v62 = vand.u32 2147483647, %v60
    %v63 = vmax.f32 %v61, 1e-08
    %v64 = vmax.f32 %v62, 1e-08
    %v65 = vrcp.pop %v63
    %v66 = vrcp.pop %v64
    %v67 = vsub.f32 %v57, %v59
    %v68 = vsub.f32 %v58, %v60
    %v69 = vand.u32 2147483647, %v67
    %v70 = vand.u32 2147483647, %v68
    %v71 = vmul.f32 %v69, %v65
    %v72 = vmul.f32 %v70, %v66
    %v73 = vld [vmem:[#allocation2] sm:$0xff]
    %v74 = vadd.f32 %v71, %v72
    %v75 = vadd.f32 %v73, %v74
    %76 = vst [vmem:[#allocation2] sm:$0xff] %v75
    // Predicated region
    $region22: #{tpu_custom_call.1} parent=1 // pred_check
      %p77 = pneg %p52
    $region23: #{tpu_custom_call.1} parent=1 // pred_check_branch
      %79 = sbr.rel (%p77) target = $region25
    $region24: #{tpu_custom_call.1} parent=1 // pred_region
      %v80 = vld [vmem:[#allocation2] sm:$0xff]
      %81 = vadd.xlane.f32.xlu0 %v80
      %v82 = vpop.xlane.xlu0 %81
      %v83 = vrot.slane %v82, 4
      %v84 = vadd.f32 %v82, %v83
      %v85 = vrot.slane %v84, 2
      %v86 = vadd.f32 %v84, %v85
      %v87 = vrot.slane %v86, 1
      %v88 = vadd.f32 %v86, %v87
      %s89 = vtos %v88
      %s90 = scalar_lea.smem [#allocation8], 0
      %91 = sst [smem:[%s90]] %s89
    $region25: #{tpu_custom_call.1} parent=1 // pred_fallthru
      _
    // Predicated region
    $region26: #{tpu_custom_call.1} parent=1 // pred_check
      _
    $region27: #{tpu_custom_call.1} parent=1 // pred_check_branch
      %93 = sbr.rel (0) target = $region29
    $region28: #{tpu_custom_call.1} parent=1 // pred_region
      %s95 = ssub.s32 16, 16
      %96 = vsyncadd [#allocation5], %s95
      %99 = dma.smem_to_hbm [#allocation8], 16, %s2, [#allocation5]
    $region29: #{tpu_custom_call.1} parent=1 // pred_fallthru
      _
    // Predicated region
    $region30: #{tpu_custom_call.1} parent=1 // pred_check
      _
    $region31: #{tpu_custom_call.1} parent=1 // pred_check_branch
      %101 = sbr.rel (0) target = $region33
    $region32: #{tpu_custom_call.1} parent=1 // pred_region
      %102 = dma.done [#allocation5], 16
    $region33: #{tpu_custom_call.1} parent=1 // pred_fallthru
      _
    %103 = sfence
    %104 = vsyncpa [#allocation4], 1
    %105 = vsyncpa [#allocation7], 1
    %106 = vsyncpa [#allocation5], 1

</llo_original>
